<compile_context>
chip_gen: v5e
topology: v5e:2x2
jax: 0.10.0
libtpu: 0.0.40
codegen_flags: <defaults>
</compile_context>

<pallas_src>
import jax
import jax.numpy as jnp
from jax.experimental import pallas as pl
from jax.experimental.pallas import tpu as pltpu

MAX_LENGTH = 10
HIDDEN = 32
OUTPUT = 16

_SEG = 128                 # lane-aligned segment width inside the slabs
_NSEG = 3                  # [attn | comb/gru-in | gru-h/out] per slab
_SLAB_W = _NSEG * _SEG     # 384
_NEG = -1.0e30             # softmax mask baked into the bias slabs


def _decoder_kernel(tok_ref,       # scalar prefetch: int32[T] token ids (SMEM)
                    emb_ref,       # (V, 1, H) f32 embedding table
                    h0_ref,        # (1, H)    f32 initial hidden
                    enc_ref,       # (128, H)  bf16 zero-padded encoder outputs
                    w1_ref,        # (2H, 384) bf16 K-stacked [emb ; h] weights
                    b1_ref,        # (1, 384)  f32 biases + attn softmax mask
                    w2_ref,        # (H, 384)  bf16 [comb_a | gru-in | out]
                    b2_ref,        # (1, 384)  f32 biases + logit softmax mask
                    out_ref,       # (1, 1, 128) f32 packed per-step output
                    h_scr):        # (1, H)    f32 carried hidden state
    f32, bf16 = jnp.float32, jnp.bfloat16
    H, L, V = HIDDEN, MAX_LENGTH, OUTPUT
    t = pl.program_id(0)

    @pl.when(t == 0)
    def _():
        h_scr[...] = h0_ref[...]

    tok = tok_ref[t]
    emb = emb_ref[tok]                         # (1, H)  dropout == identity
    h = h_scr[...]                             # (1, H)  f32 carry

    # --- MXU pass A (K-stacked): attn logits + comb_e partial + GRU h-gates --
    eh = jnp.concatenate([emb, h], axis=-1).astype(bf16)        # (1, 2H)
    a1 = jnp.dot(eh, w1_ref[...], preferred_element_type=f32) + b1_ref[...]

    # segment 0: attention logits (valid lanes 0..L-1, others biased to -1e30)
    logits_a = a1[:, 0:_SEG]
    m = jnp.max(logits_a, axis=-1, keepdims=True)
    e = jnp.exp(logits_a - m)
    attn_w_full = e / jnp.sum(e, axis=-1, keepdims=True)        # exact softmax

    # --- MXU pass B: attn_applied = attn_w @ encoder_outputs ----------------
    attn_applied = jnp.dot(attn_w_full.astype(bf16), enc_ref[...],
                           preferred_element_type=f32)          # (1, H)

    # --- MXU pass C: attn_combine (+ relu); emb-side partial from pass A ----
    comb = jnp.dot(attn_applied.astype(bf16), w2_ref[:, 0:_SEG],
                   preferred_element_type=f32)                  # (1, 128)
    x_full = jnp.maximum(a1[:, _SEG:2 * _SEG] + comb, 0.0)      # valid 0..H-1

    # --- MXU pass D: GRU input gates; hidden gates from pass A segment 2 ----
    gi = jnp.dot(x_full[:, 0:H].astype(bf16), w2_ref[:, _SEG:2 * _SEG],
                 preferred_element_type=f32) + b2_ref[:, _SEG:2 * _SEG]
    gh = a1[:, 2 * _SEG:3 * _SEG]                               # (1,128) r|z|n

    rz = jax.nn.sigmoid(gi[:, 0:2 * H] + gh[:, 0:2 * H])
    r, z = rz[:, 0:H], rz[:, H:2 * H]
    n = jnp.tanh(gi[:, 2 * H:3 * H] + r * gh[:, 2 * H:3 * H])
    h_new = (1.0 - z) * n + z * h                               # (1, H) f32
    h_scr[...] = h_new

    # --- MXU pass E: output projection + log_softmax (mask baked in b2) -----
    logits = (jnp.dot(h_new.astype(bf16), w2_ref[:, 2 * _SEG:3 * _SEG],
                      preferred_element_type=f32)
              + b2_ref[:, 2 * _SEG:3 * _SEG])                   # (1,128)
    lm = jnp.max(logits, axis=-1, keepdims=True)
    lse = lm + jnp.log(jnp.sum(jnp.exp(logits - lm), axis=-1, keepdims=True))
    logp = logits - lse

    # --- three lane-aligned sub-stores ---------------------------------------
    out_ref[0, :, 0:V] = logp[:, 0:V]
    out_ref[0, :, 32:32 + H] = h_new
    out_ref[0, :, 64:64 + L] = attn_w_full[:, 0:L]


def pack_params(params):
    """Pack per-matrix params into two lane-aligned slabs (built once)."""
    H, L, V = HIDDEN, MAX_LENGTH, OUTPUT

    # W1: (2H, 384).  Rows 0..H-1 multiply `emb`, rows H..2H-1 multiply `h`.
    W1 = jnp.zeros((2 * H, _SLAB_W), jnp.float32)
    W1 = W1.at[0:H, 0:L].set(params["W_attn_e"])            # seg0: attn (emb)
    W1 = W1.at[H:2 * H, 0:L].set(params["W_attn_h"])        # seg0: attn (h)
    W1 = W1.at[0:H, _SEG:_SEG + H].set(params["W_comb_e"])  # seg1: comb (emb)
    W1 = W1.at[H:2 * H, 2 * _SEG + 0 * H:2 * _SEG + 1 * H].set(params["W_hr"])
    W1 = W1.at[H:2 * H, 2 * _SEG + 1 * H:2 * _SEG + 2 * H].set(params["W_hz"])
    W1 = W1.at[H:2 * H, 2 * _SEG + 2 * H:2 * _SEG + 3 * H].set(params["W_hn"])

    b1 = jnp.zeros((1, _SLAB_W), jnp.float32)
    b1 = b1.at[:, 0:L].set(params["b_attn"])
    b1 = b1.at[:, L:_SEG].set(_NEG)                          # attn softmax mask
    b1 = b1.at[:, _SEG:_SEG + H].set(params["b_comb"])
    b1 = b1.at[:, 2 * _SEG + 0 * H:2 * _SEG + 1 * H].set(params["b_hr"])
    b1 = b1.at[:, 2 * _SEG + 1 * H:2 * _SEG + 2 * H].set(params["b_hz"])
    b1 = b1.at[:, 2 * _SEG + 2 * H:2 * _SEG + 3 * H].set(params["b_hn"])

    # W2: (H, 384): [W_comb_a | W_ir|W_iz|W_in | W_out]
    W2 = jnp.zeros((H, _SLAB_W), jnp.float32)
    W2 = W2.at[:, 0:H].set(params["W_comb_a"])
    W2 = W2.at[:, _SEG + 0 * H:_SEG + 1 * H].set(params["W_ir"])
    W2 = W2.at[:, _SEG + 1 * H:_SEG + 2 * H].set(params["W_iz"])
    W2 = W2.at[:, _SEG + 2 * H:_SEG + 3 * H].set(params["W_in"])
    W2 = W2.at[:, 2 * _SEG:2 * _SEG + V].set(params["W_out"])

    b2 = jnp.zeros((1, _SLAB_W), jnp.float32)
    b2 = b2.at[:, _SEG + 0 * H:_SEG + 1 * H].set(params["b_ir"])
    b2 = b2.at[:, _SEG + 1 * H:_SEG + 2 * H].set(params["b_iz"])
    b2 = b2.at[:, _SEG + 2 * H:_SEG + 3 * H].set(params["b_in"])
    b2 = b2.at[:, 2 * _SEG:2 * _SEG + V].set(params["b_out"])
    b2 = b2.at[:, 2 * _SEG + V:3 * _SEG].set(_NEG)           # log_softmax mask

    return {
        "emb_tab": params["embedding"].reshape(V, 1, H).astype(jnp.float32),
        "W1": W1.astype(jnp.bfloat16), "b1": b1,
        "W2": W2.astype(jnp.bfloat16), "b2": b2,
    }


def attn_decoder_decode(tokens, hidden, encoder_outputs, packed):
    """Run T decoder steps (hidden carried in-kernel).

    tokens: int32 (T,); hidden: (1,1,H); encoder_outputs: (L,H).
    Returns per-step (log_probs (T,V), hidden (T,H), attn_weights (T,L)).
    """
    H, L, V = HIDDEN, MAX_LENGTH, OUTPUT
    T = tokens.shape[0]
    h0 = hidden.reshape(1, H).astype(jnp.float32)
    enc_pad = (jnp.zeros((_SEG, H), jnp.float32)
               .at[0:L].set(encoder_outputs.astype(jnp.float32))
               .astype(jnp.bfloat16))

    def const(shape):
        return pl.BlockSpec(shape, lambda t, tok: (0,) * len(shape))

    grid_spec = pltpu.PrefetchScalarGridSpec(
        num_scalar_prefetch=1,
        grid=(T,),
        in_specs=[
            const((V, 1, H)),           # embedding table  (VMEM-resident)
            const((1, H)),              # initial hidden
            const((_SEG, H)),           # padded encoder outputs
            const((2 * H, _SLAB_W)),    # W1
            const((1, _SLAB_W)),        # b1
            const((H, _SLAB_W)),        # W2
            const((1, _SLAB_W)),        # b2
        ],
        out_specs=pl.BlockSpec((1, 1, _SEG), lambda t, tok: (t, 0, 0)),
        scratch_shapes=[pltpu.VMEM((1, H), jnp.float32)],
    )

    fn = pl.pallas_call(
        _decoder_kernel,
        grid_spec=grid_spec,
        out_shape=jax.ShapeDtypeStruct((T, 1, _SEG), jnp.float32),
        compiler_params=pltpu.CompilerParams(
            dimension_semantics=("arbitrary",)),     # sequential recurrence
    )
    packed_out = fn(tokens.astype(jnp.int32), packed["emb_tab"], h0, enc_pad,
                    packed["W1"], packed["b1"], packed["W2"], packed["b2"])
    packed_out = packed_out.reshape(T, _SEG)
    outs = packed_out[:, 0:V]
    hs = packed_out[:, 32:32 + H]
    attn_ws = packed_out[:, 64:64 + L]
    return outs, hs, attn_ws


def attn_decoder_forward(token, hidden, encoder_outputs, packed):
    """Single-step forward matching the PyTorch module's signature/shapes."""
    outs, hs, attn_ws = attn_decoder_decode(token.reshape(-1), hidden,
                                            encoder_outputs, packed)
    return outs[0:1], hs[-1].reshape(1, 1, HIDDEN), attn_ws[0:1]


def make_params(key):
    H, L, V = HIDDEN, MAX_LENGTH, OUTPUT
    keys = jax.random.split(key, 24)
    s = 0.1

    def rnd(k, shape):
        return (s * jax.random.normal(k, shape)).astype(jnp.float32)

    return {
        "embedding": rnd(keys[0], (V, H)),
        # attn: Linear(2H -> L), split over the concatenation [emb ; hidden]
        "W_attn_e": rnd(keys[1], (H, L)),
        "W_attn_h": rnd(keys[2], (H, L)),
        "b_attn":   rnd(keys[3], (1, L)),
        # attn_combine: Linear(2H -> H), split over [emb ; attn_applied]
        "W_comb_e": rnd(keys[4], (H, H)),
        "W_comb_a": rnd(keys[5], (H, H)),
        "b_comb":   rnd(keys[6], (1, H)),
        # GRU (torch gate order r, z, n), stored transposed to (in, out)
        "W_ir": rnd(keys[7], (H, H)),  "W_iz": rnd(keys[8], (H, H)),
        "W_in": rnd(keys[9], (H, H)),
        "W_hr": rnd(keys[10], (H, H)), "W_hz": rnd(keys[11], (H, H)),
        "W_hn": rnd(keys[12], (H, H)),
        "b_ir": rnd(keys[13], (1, H)), "b_iz": rnd(keys[14], (1, H)),
        "b_in": rnd(keys[15], (1, H)),
        "b_hr": rnd(keys[16], (1, H)), "b_hz": rnd(keys[17], (1, H)),
        "b_hn": rnd(keys[18], (1, H)),
        # out: Linear(H -> V)
        "W_out": rnd(keys[19], (H, V)),
        "b_out": rnd(keys[20], (1, V)),
    }


def reference_forward(token, hidden, encoder_outputs, params):
    """Pure-JAX (f32) reference mirroring the PyTorch forward (eval mode)."""
    H = HIDDEN
    emb = params["embedding"][token[0]][None, :]
    h = hidden.reshape(1, H)
    attn_logits = (emb @ params["W_attn_e"] + h @ params["W_attn_h"]
                   + params["b_attn"])
    attn_w = jax.nn.softmax(attn_logits, axis=-1)
    attn_applied = attn_w @ encoder_outputs
    x = jax.nn.relu(emb @ params["W_comb_e"]
                    + attn_applied @ params["W_comb_a"] + params["b_comb"])
    gi_r = x @ params["W_ir"] + params["b_ir"]
    gi_z = x @ params["W_iz"] + params["b_iz"]
    gi_n = x @ params["W_in"] + params["b_in"]
    gh_r = h @ params["W_hr"] + params["b_hr"]
    gh_z = h @ params["W_hz"] + params["b_hz"]
    gh_n = h @ params["W_hn"] + params["b_hn"]
    r = jax.nn.sigmoid(gi_r + gh_r)
    z = jax.nn.sigmoid(gi_z + gh_z)
    n = jnp.tanh(gi_n + r * gh_n)
    h_new = (1.0 - z) * n + z * h
    out = jax.nn.log_softmax(h_new @ params["W_out"] + params["b_out"], axis=-1)
    return out, h_new.reshape(1, 1, H), attn_w


def reference_decode(tokens, hidden, encoder_outputs, params):
    outs, attns = [], []
    h = hidden
    for t in range(tokens.shape[0]):
        o, h, a = reference_forward(tokens[t:t + 1], h, encoder_outputs, params)
        outs.append(o)
        attns.append(a)
    return jnp.concatenate(outs, 0), h, jnp.concatenate(attns, 0)


if __name__ == "__main__":
    key = jax.random.PRNGKey(0)
    pkey, hkey, ekey = jax.random.split(key, 3)

    params = make_params(pkey)
    packed = pack_params(params)        # built once, reused for every step

    T = 4
    tokens = jnp.array([3, 7, 1, 12], dtype=jnp.int32)            # (T,)
    hidden = (0.1 * jax.random.normal(hkey, (1, 1, HIDDEN))).astype(jnp.float32)
    encoder_outputs = (0.1 * jax.random.normal(
        ekey, (MAX_LENGTH, HIDDEN))).astype(jnp.float32)

    decode = jax.jit(attn_decoder_decode)
    outs, hs, attn_ws = decode(tokens, hidden, encoder_outputs, packed)
    jax.block_until_ready((outs, hs, attn_ws))

    assert outs.shape == (T, OUTPUT)
    assert hs.shape == (T, HIDDEN)
    assert attn_ws.shape == (T, MAX_LENGTH)
    # exact-softmax rows sum to 1
    assert float(jnp.max(jnp.abs(jnp.sum(attn_ws, axis=-1) - 1.0))) < 1e-4
    assert float(jnp.max(jnp.abs(jnp.sum(jnp.exp(outs), axis=-1) - 1.0))) < 1e-4

    # numerical check against a pure-JAX f32 reference of the PyTorch forward
    ref_outs, ref_h, ref_attn = reference_decode(tokens, hidden,
                                                 encoder_outputs, params)
    assert jnp.allclose(outs, ref_outs, atol=5e-3, rtol=5e-3)
    assert jnp.allclose(hs[-1].reshape(1, 1, HIDDEN), ref_h,
                        atol=5e-3, rtol=5e-3)
    assert jnp.allclose(attn_ws, ref_attn, atol=5e-3, rtol=5e-3)

    # single-step module-equivalent forward (PyTorch signature / shapes)
    out1, h1, aw1 = jax.jit(attn_decoder_forward)(tokens[0:1], hidden,
                                                  encoder_outputs, packed)
    jax.block_until_ready((out1, h1, aw1))
    assert out1.shape == (1, OUTPUT)
    assert h1.shape == (1, 1, HIDDEN)
    assert aw1.shape == (1, MAX_LENGTH)
    ro, rh, ra = reference_forward(tokens[0:1], hidden, encoder_outputs, params)
    assert jnp.allclose(out1, ro, atol=5e-3, rtol=5e-3)
    assert jnp.allclose(h1, rh, atol=5e-3, rtol=5e-3)
    assert jnp.allclose(aw1, ra, atol=5e-3, rtol=5e-3)

    print("KERNEL_OK")
</pallas_src>

<mosaic_0001>
module attributes {stable_mosaic.version = 11 : i64} {
  func.func @_decoder_kernel(%arg0: i32, %arg1: memref<4xi32, #tpu.memory_space<smem>>, %arg2: memref<16x1x32xf32, #tpu.memory_space<vmem>>, %arg3: memref<1x32xf32, #tpu.memory_space<vmem>>, %arg4: memref<128x32xbf16, #tpu.memory_space<vmem>>, %arg5: memref<64x384xbf16, #tpu.memory_space<vmem>>, %arg6: memref<1x384xf32, #tpu.memory_space<vmem>>, %arg7: memref<32x384xbf16, #tpu.memory_space<vmem>>, %arg8: memref<1x384xf32, #tpu.memory_space<vmem>>, %arg9: memref<1x1x128xf32, #tpu.memory_space<vmem>>, %arg10: memref<1x32xf32, #tpu.memory_space<vmem>>) attributes {dimension_semantics = [#tpu.dimension_semantics<arbitrary>], iteration_bounds = array<i64: 4>, scalar_prefetch = 1 : i64, scratch_operands = 1 : i64, tpu.core_type = #tpu.core_type<tc>, window_params = [{pipeline_mode = #tpu.pipeline_mode<synchronous>, transform_indices = @transform_0, window_bounds = array<i64: 16, 1, 32>}, {pipeline_mode = #tpu.pipeline_mode<synchronous>, transform_indices = @transform_1, window_bounds = array<i64: 1, 32>}, {pipeline_mode = #tpu.pipeline_mode<synchronous>, transform_indices = @transform_2, window_bounds = array<i64: 128, 32>}, {pipeline_mode = #tpu.pipeline_mode<synchronous>, transform_indices = @transform_3, window_bounds = array<i64: 64, 384>}, {pipeline_mode = #tpu.pipeline_mode<synchronous>, transform_indices = @transform_4, window_bounds = array<i64: 1, 384>}, {pipeline_mode = #tpu.pipeline_mode<synchronous>, transform_indices = @transform_5, window_bounds = array<i64: 32, 384>}, {pipeline_mode = #tpu.pipeline_mode<synchronous>, transform_indices = @transform_6, window_bounds = array<i64: 1, 384>}, {transform_indices = @transform_7, window_bounds = array<i64: 1, 1, 128>}]} {
    %c0_i32 = arith.constant 0 : i32
    %0 = arith.cmpi eq, %arg0, %c0_i32 : i32
    %1 = arith.extui %0 : i1 to i32
    %c0_i32_0 = arith.constant 0 : i32
    %2 = arith.cmpi ne, %1, %c0_i32_0 : i32
    scf.if %2 {
      %c0_38 = arith.constant 0 : index
      %c0_39 = arith.constant 0 : index
      %90 = vector.load %arg3[%c0_38, %c0_39] : memref<1x32xf32, #tpu.memory_space<vmem>>, vector<1x32xf32>
      %c0_40 = arith.constant 0 : index
      %c0_41 = arith.constant 0 : index
      %91 = vector.load %arg10[%c0_40, %c0_41] : memref<1x32xf32, #tpu.memory_space<vmem>>, vector<1x32xf32>
      tpu.vector_store %arg10[%c0_40, %c0_41], %90 {strides = array<i32>} : memref<1x32xf32, #tpu.memory_space<vmem>>, vector<1x32xf32>,
    } else {
    }
    %3 = arith.index_cast %arg0 : i32 to index
    %4 = memref.load %arg1[%3] : memref<4xi32, #tpu.memory_space<smem>>
    %5 = arith.index_cast %4 : i32 to index
    %c0 = arith.constant 0 : index
    %c0_1 = arith.constant 0 : index
    %6 = vector.load %arg2[%5, %c0, %c0_1] : memref<16x1x32xf32, #tpu.memory_space<vmem>>, vector<1x1x32xf32>
    %7 = vector.shape_cast %6 : vector<1x1x32xf32> to vector<1x32xf32>
    %c0_2 = arith.constant 0 : index
    %c0_3 = arith.constant 0 : index
    %8 = vector.load %arg10[%c0_2, %c0_3] : memref<1x32xf32, #tpu.memory_space<vmem>>, vector<1x32xf32>
    %9 = tpu.concatenate %7, %8 in 1 : vector<1x32xf32>, vector<1x32xf32> -> vector<1x64xf32>
    %10 = arith.truncf %9 : vector<1x64xf32> to vector<1x64xbf16>
    %c0_4 = arith.constant 0 : index
    %c0_5 = arith.constant 0 : index
    %11 = vector.load %arg5[%c0_4, %c0_5] : memref<64x384xbf16, #tpu.memory_space<vmem>>, vector<64x384xbf16>
    %cst = arith.constant dense<0.000000e+00> : vector<1x384xf32>
    %12 = tpu.matmul %10, %11, %cst {dimension_numbers = #tpu.dot_dimension_numbers<[1], [0], [0], [1], [0, 0, 1, 1], [], []>} : vector<1x64xbf16>, vector<64x384xbf16>, vector<1x384xf32> -> vector<1x384xf32>
    %c0_6 = arith.constant 0 : index
    %c0_7 = arith.constant 0 : index
    %13 = vector.load %arg6[%c0_6, %c0_7] : memref<1x384xf32, #tpu.memory_space<vmem>>, vector<1x384xf32>
    %14 = arith.addf %12, %13 : vector<1x384xf32>
    %15 = vector.extract_strided_slice %14 {offsets = [0, 0], sizes = [1, 128], strides = [1, 1]} : vector<1x384xf32> to vector<1x128xf32>
    %cst_8 = arith.constant dense<0xFF800000> : vector<1xf32>
    %16 = vector.multi_reduction <maximumf>, %15, %cst_8 [1] : vector<1x128xf32> to vector<1xf32>
    %17 = vector.shape_cast %16 : vector<1xf32> to vector<1x1xf32>
    %18 = vector.broadcast %17 : vector<1x1xf32> to vector<1x128xf32>
    %19 = arith.subf %15, %18 : vector<1x128xf32>
    %20 = math.exp %19 : vector<1x128xf32>
    %cst_9 = arith.constant dense<0.000000e+00> : vector<1xf32>
    %21 = vector.multi_reduction <add>, %20, %cst_9 [1] : vector<1x128xf32> to vector<1xf32>
    %22 = vector.shape_cast %21 : vector<1xf32> to vector<1x1xf32>
    %23 = vector.broadcast %22 : vector<1x1xf32> to vector<1x128xf32>
    %24 = arith.divf %20, %23 : vector<1x128xf32>
    %25 = arith.truncf %24 : vector<1x128xf32> to vector<1x128xbf16>
    %c0_10 = arith.constant 0 : index
    %c0_11 = arith.constant 0 : index
    %26 = vector.load %arg4[%c0_10, %c0_11] : memref<128x32xbf16, #tpu.memory_space<vmem>>, vector<128x32xbf16>
    %cst_12 = arith.constant dense<0.000000e+00> : vector<1x32xf32>
    %27 = tpu.matmul %25, %26, %cst_12 {dimension_numbers = #tpu.dot_dimension_numbers<[1], [0], [0], [1], [0, 0, 1, 1], [], []>} : vector<1x128xbf16>, vector<128x32xbf16>, vector<1x32xf32> -> vector<1x32xf32>
    %28 = arith.truncf %27 : vector<1x32xf32> to vector<1x32xbf16>
    %c0_13 = arith.constant 0 : index
    %c0_14 = arith.constant 0 : index
    %29 = vector.load %arg7[%c0_13, %c0_14] : memref<32x384xbf16, #tpu.memory_space<vmem>>, vector<32x128xbf16>
    %cst_15 = arith.constant dense<0.000000e+00> : vector<1x128xf32>
    %30 = tpu.matmul %28, %29, %cst_15 {dimension_numbers = #tpu.dot_dimension_numbers<[1], [0], [0], [1], [0, 0, 1, 1], [], []>} : vector<1x32xbf16>, vector<32x128xbf16>, vector<1x128xf32> -> vector<1x128xf32>
    %31 = vector.extract_strided_slice %14 {offsets = [0, 128], sizes = [1, 128], strides = [1, 1]} : vector<1x384xf32> to vector<1x128xf32>
    %32 = arith.addf %31, %30 : vector<1x128xf32>
    %cst_16 = arith.constant 0.000000e+00 : f32
    %33 = vector.broadcast %cst_16 : f32 to vector<1x128xf32>
    %34 = arith.maximumf %32, %33 : vector<1x128xf32>
    %35 = vector.extract_strided_slice %34 {offsets = [0, 0], sizes = [1, 32], strides = [1, 1]} : vector<1x128xf32> to vector<1x32xf32>
    %36 = arith.truncf %35 : vector<1x32xf32> to vector<1x32xbf16>
    %c0_17 = arith.constant 0 : index
    %c128 = arith.constant 128 : index
    %37 = vector.load %arg7[%c0_17, %c128] : memref<32x384xbf16, #tpu.memory_space<vmem>>, vector<32x128xbf16>
    %cst_18 = arith.constant dense<0.000000e+00> : vector<1x128xf32>
    %38 = tpu.matmul %36, %37, %cst_18 {dimension_numbers = #tpu.dot_dimension_numbers<[1], [0], [0], [1], [0, 0, 1, 1], [], []>} : vector<1x32xbf16>, vector<32x128xbf16>, vector<1x128xf32> -> vector<1x128xf32>
    %c0_19 = arith.constant 0 : index
    %c128_20 = arith.constant 128 : index
    %39 = vector.load %arg8[%c0_19, %c128_20] : memref<1x384xf32, #tpu.memory_space<vmem>>, vector<1x128xf32>
    %40 = arith.addf %38, %39 : vector<1x128xf32>
    %41 = vector.extract_strided_slice %14 {offsets = [0, 256], sizes = [1, 128], strides = [1, 1]} : vector<1x384xf32> to vector<1x128xf32>
    %42 = vector.extract_strided_slice %40 {offsets = [0, 0], sizes = [1, 64], strides = [1, 1]} : vector<1x128xf32> to vector<1x64xf32>
    %43 = vector.extract_strided_slice %41 {offsets = [0, 0], sizes = [1, 64], strides = [1, 1]} : vector<1x128xf32> to vector<1x64xf32>
    %44 = arith.addf %42, %43 : vector<1x64xf32>
    %45 = arith.negf %44 : vector<1x64xf32>
    %46 = math.exp %45 : vector<1x64xf32>
    %cst_21 = arith.constant 1.000000e+00 : f32
    %47 = vector.broadcast %cst_21 : f32 to vector<1x64xf32>
    %48 = arith.addf %47, %46 : vector<1x64xf32>
    %49 = arith.divf %47, %48 : vector<1x64xf32>
    %50 = vector.extract_strided_slice %49 {offsets = [0, 0], sizes = [1, 32], strides = [1, 1]} : vector<1x64xf32> to vector<1x32xf32>
    %51 = vector.extract_strided_slice %49 {offsets = [0, 32], sizes = [1, 32], strides = [1, 1]} : vector<1x64xf32> to vector<1x32xf32>
    %52 = vector.extract_strided_slice %40 {offsets = [0, 64], sizes = [1, 32], strides = [1, 1]} : vector<1x128xf32> to vector<1x32xf32>
    %53 = vector.extract_strided_slice %41 {offsets = [0, 64], sizes = [1, 32], strides = [1, 1]} : vector<1x128xf32> to vector<1x32xf32>
    %54 = arith.mulf %50, %53 : vector<1x32xf32>
    %55 = arith.addf %52, %54 : vector<1x32xf32>
    %56 = math.tanh %55 : vector<1x32xf32>
    %cst_22 = arith.constant 1.000000e+00 : f32
    %57 = vector.broadcast %cst_22 : f32 to vector<1x32xf32>
    %58 = arith.subf %57, %51 : vector<1x32xf32>
    %59 = arith.mulf %58, %56 : vector<1x32xf32>
    %60 = arith.mulf %51, %8 : vector<1x32xf32>
    %61 = arith.addf %59, %60 : vector<1x32xf32>
    %c0_23 = arith.constant 0 : index
    %c0_24 = arith.constant 0 : index
    %62 = vector.load %arg10[%c0_23, %c0_24] : memref<1x32xf32, #tpu.memory_space<vmem>>, vector<1x32xf32>
    tpu.vector_store %arg10[%c0_23, %c0_24], %61 {strides = array<i32>} : memref<1x32xf32, #tpu.memory_space<vmem>>, vector<1x32xf32>,
    %63 = arith.truncf %61 : vector<1x32xf32> to vector<1x32xbf16>
    %c0_25 = arith.constant 0 : index
    %c256 = arith.constant 256 : index
    %64 = vector.load %arg7[%c0_25, %c256] : memref<32x384xbf16, #tpu.memory_space<vmem>>, vector<32x128xbf16>
    %cst_26 = arith.constant dense<0.000000e+00> : vector<1x128xf32>
    %65 = tpu.matmul %63, %64, %cst_26 {dimension_numbers = #tpu.dot_dimension_numbers<[1], [0], [0], [1], [0, 0, 1, 1], [], []>} : vector<1x32xbf16>, vector<32x128xbf16>, vector<1x128xf32> -> vector<1x128xf32>
    %c0_27 = arith.constant 0 : index
    %c256_28 = arith.constant 256 : index
    %66 = vector.load %arg8[%c0_27, %c256_28] : memref<1x384xf32, #tpu.memory_space<vmem>>, vector<1x128xf32>
    %67 = arith.addf %65, %66 : vector<1x128xf32>
    %cst_29 = arith.constant dense<0xFF800000> : vector<1xf32>
    %68 = vector.multi_reduction <maximumf>, %67, %cst_29 [1] : vector<1x128xf32> to vector<1xf32>
    %69 = vector.shape_cast %68 : vector<1xf32> to vector<1x1xf32>
    %70 = vector.broadcast %69 : vector<1x1xf32> to vector<1x128xf32>
    %71 = arith.subf %67, %70 : vector<1x128xf32>
    %72 = math.exp %71 : vector<1x128xf32>
    %cst_30 = arith.constant dense<0.000000e+00> : vector<1xf32>
    %73 = vector.multi_reduction <add>, %72, %cst_30 [1] : vector<1x128xf32> to vector<1xf32>
    %74 = vector.shape_cast %73 : vector<1xf32> to vector<1x1xf32>
    %75 = math.log %74 : vector<1x1xf32>
    %76 = arith.addf %69, %75 : vector<1x1xf32>
    %77 = vector.broadcast %76 : vector<1x1xf32> to vector<1x128xf32>
    %78 = arith.subf %67, %77 : vector<1x128xf32>
    %79 = vector.extract_strided_slice %78 {offsets = [0, 0], sizes = [1, 16], strides = [1, 1]} : vector<1x128xf32> to vector<1x16xf32>
    %c0_31 = arith.constant 0 : index
    %c0_32 = arith.constant 0 : index
    %c0_33 = arith.constant 0 : index
    %80 = vector.load %arg9[%c0_31, %c0_32, %c0_33] : memref<1x1x128xf32, #tpu.memory_space<vmem>>, vector<1x1x16xf32>
    %81 = vector.shape_cast %80 : vector<1x1x16xf32> to vector<1x16xf32>
    %82 = vector.shape_cast %79 : vector<1x16xf32> to vector<1x1x16xf32>
    tpu.vector_store %arg9[%c0_31, %c0_32, %c0_33], %82 {strides = array<i32>} : memref<1x1x128xf32, #tpu.memory_space<vmem>>, vector<1x1x16xf32>,
    %c0_34 = arith.constant 0 : index
    %c0_35 = arith.constant 0 : index
    %c32 = arith.constant 32 : index
    %83 = vector.load %arg9[%c0_34, %c0_35, %c32] : memref<1x1x128xf32, #tpu.memory_space<vmem>>, vector<1x1x32xf32>
    %84 = vector.shape_cast %83 : vector<1x1x32xf32> to vector<1x32xf32>
    %85 = vector.shape_cast %61 : vector<1x32xf32> to vector<1x1x32xf32>
    tpu.vector_store %arg9[%c0_34, %c0_35, %c32], %85 {strides = array<i32>} : memref<1x1x128xf32, #tpu.memory_space<vmem>>, vector<1x1x32xf32>,
    %86 = vector.extract_strided_slice %24 {offsets = [0, 0], sizes = [1, 10], strides = [1, 1]} : vector<1x128xf32> to vector<1x10xf32>
    %c0_36 = arith.constant 0 : index
    %c0_37 = arith.constant 0 : index
    %c64 = arith.constant 64 : index
    %87 = vector.load %arg9[%c0_36, %c0_37, %c64] : memref<1x1x128xf32, #tpu.memory_space<vmem>>, vector<1x1x10xf32>
    %88 = vector.shape_cast %87 : vector<1x1x10xf32> to vector<1x10xf32>
    %89 = vector.shape_cast %86 : vector<1x10xf32> to vector<1x1x10xf32>
    tpu.vector_store %arg9[%c0_36, %c0_37, %c64], %89 {strides = array<i32>} : memref<1x1x128xf32, #tpu.memory_space<vmem>>, vector<1x1x10xf32>,
    return
  }
  func.func @transform_0(%arg0: i32, %arg1: memref<4xi32, #tpu.memory_space<smem>>) -> (i32, i32, i32) {
    %c0_i32 = arith.constant 0 : i32
    %c0_i32_0 = arith.constant 0 : i32
    %c0_i32_1 = arith.constant 0 : i32
    %c0_i32_2 = arith.constant 0 : i32
    return %c0_i32, %c0_i32_0, %c0_i32_1 : i32, i32, i32
  }
  func.func @transform_1(%arg0: i32, %arg1: memref<4xi32, #tpu.memory_space<smem>>) -> (i32, i32) {
    %c0_i32 = arith.constant 0 : i32
    %c0_i32_0 = arith.constant 0 : i32
    %c0_i32_1 = arith.constant 0 : i32
    return %c0_i32, %c0_i32_0 : i32, i32
  }
  func.func @transform_2(%arg0: i32, %arg1: memref<4xi32, #tpu.memory_space<smem>>) -> (i32, i32) {
    %c0_i32 = arith.constant 0 : i32
    %c0_i32_0 = arith.constant 0 : i32
    %c0_i32_1 = arith.constant 0 : i32
    return %c0_i32, %c0_i32_0 : i32, i32
  }
  func.func @transform_3(%arg0: i32, %arg1: memref<4xi32, #tpu.memory_space<smem>>) -> (i32, i32) {
    %c0_i32 = arith.constant 0 : i32
    %c0_i32_0 = arith.constant 0 : i32
    %c0_i32_1 = arith.constant 0 : i32
    return %c0_i32, %c0_i32_0 : i32, i32
  }
  func.func @transform_4(%arg0: i32, %arg1: memref<4xi32, #tpu.memory_space<smem>>) -> (i32, i32) {
    %c0_i32 = arith.constant 0 : i32
    %c0_i32_0 = arith.constant 0 : i32
    %c0_i32_1 = arith.constant 0 : i32
    return %c0_i32, %c0_i32_0 : i32, i32
  }
  func.func @transform_5(%arg0: i32, %arg1: memref<4xi32, #tpu.memory_space<smem>>) -> (i32, i32) {
    %c0_i32 = arith.constant 0 : i32
    %c0_i32_0 = arith.constant 0 : i32
    %c0_i32_1 = arith.constant 0 : i32
    return %c0_i32, %c0_i32_0 : i32, i32
  }
  func.func @transform_6(%arg0: i32, %arg1: memref<4xi32, #tpu.memory_space<smem>>) -> (i32, i32) {
    %c0_i32 = arith.constant 0 : i32
    %c0_i32_0 = arith.constant 0 : i32
    %c0_i32_1 = arith.constant 0 : i32
    return %c0_i32, %c0_i32_0 : i32, i32
  }
  func.func @transform_7(%arg0: i32, %arg1: memref<4xi32, #tpu.memory_space<smem>>) -> (i32, i32, i32) {
    %c0_i32 = arith.constant 0 : i32
    %c0_i32_0 = arith.constant 0 : i32
    %c0_i32_1 = arith.constant 0 : i32
    return %arg0, %c0_i32, %c0_i32_0 : i32, i32, i32
  }
}

</mosaic_0001>

<llo_original>
// kernel: attn_decoder_decode.1
$region0: #{attn_decoder_decode.1}
  #allocation0 [shape = 'u32[]', space=smem, size = 0x4, offset = 0x4, fixed_abs, tag = 'smem constant byte address 0x4 - core index']
  #allocation1 [shape = 'u32[72,128]{1,0:T(1,128)}', space=vmem, size = 0x9000, scoped, tag = 'internal scratch']
  #allocation2 [shape = 'f32[1,32]{1,0:T(1,128)}', space=vmem, size = 0x200, scoped, tag = 'scratch operand']
  #allocation3 [shape = 's32[1]{0}', space=sflag, size = 0x4, scoped, tag = 'scoped memory for attn_decoder_decode.1']
  #allocation4 [shape = 'u8[512]{0}', space=smem, size = 0x200, scoped, tag = 'prefetched SMEM operand 0']
  %s0 = inlined_call_operand.hbm [shape: s32[4], index: 0, kind: input, shape index: {}]
  %s1 = inlined_call_operand.hbm [shape: f32[16,1,32], index: 1, kind: input, shape index: {}]
  %s2 = inlined_call_operand.hbm [shape: f32[1,32], index: 2, kind: input, shape index: {}]
  %s3 = inlined_call_operand.vmem [shape: bf16[128,32], index: 3, kind: input, shape index: {}]
  %s4 = inlined_call_operand.vmem [shape: bf16[64,384], index: 4, kind: input, shape index: {}]
  %s5 = inlined_call_operand.vmem [shape: f32[1,384], index: 5, kind: input, shape index: {}]
  %s6 = inlined_call_operand.hbm [shape: bf16[32,384], index: 6, kind: input, shape index: {}]
  %s7 = inlined_call_operand.vmem [shape: f32[1,384], index: 7, kind: input, shape index: {}]
  %s8 = inlined_call_operand.vmem [shape: f32[4,1,128], index: 8, kind: output, shape index: {}]
  %s9 = sld [smem:[#allocation0]]
  $region77: #{attn_decoder_decode.1} parent=0
    _
  %s11 = ssub.s32 1, %s9
  %s12 = scalar_select 0, %s11, %s9
  %s14 = sshll.u32 %s0, 4
  %s15 = int_to_ptr.hbm [resolvable:$true] %s14
  %17 = dma.hbm_to_smem %s15, 16, [#allocation4], [#allocation3]
  %19 = dma.done [#allocation3], 16
  %20 = sfence
  $region1: #{attn_decoder_decode.1} parent=0
    #allocation5 [shape = 'u8[8192]{0}', space=vmem, size = 0x2000, scoped, tag = 'input window, operand 1, single buffered']
    #allocation6 [shape = 's32[2]{0}', space=sflag, size = 0x8, scoped, tag = 'scoped memory for attn_decoder_decode.1']
    #allocation7 [shape = 'u8[512]{0}', space=vmem, size = 0x400, scoped, tag = 'input window, operand 2, single buffered']
    #allocation8 [shape = 's32[1]{0}', space=sflag, size = 0x4, scoped, tag = 'scoped memory for attn_decoder_decode.1']
    #allocation9 [shape = 'u8[24576]{0}', space=vmem, size = 0x6000, scoped, tag = 'input window, operand 6, single buffered']
    %21 = vsyncpa [#allocation6], 0
    %22 = vsyncpa [#allocation8], 0
    loop: start=0, step=1, limit=6
    $region2: #{attn_decoder_decode.1} parent=1 // loop_pre_header
      _
    $region3: #{attn_decoder_decode.1} parent=1 // loop_header
      %s24 = sphi 0, %s28
      %p25 = scmp.ge.s32.totalorder %s24, 6
      %s32 = sphi 0, %s32
      %s34 = sphi 0, %s32
      %s35 = sphi 0, %s34
      %s49 = sphi 0, %s35
      %s53 = sphi 0, %s53
      %s55 = sphi 0, %s53
      %s56 = sphi 0, %s55
      %s70 = sphi 0, %s56
      %s74 = sphi 0, %s74
      %s76 = sphi 0, %s74
      %s77 = sphi 0, %s76
      %s91 = sphi 0, %s77
      %s95 = sphi 0, %s95
      %s97 = sphi 0, %s95
      %s98 = sphi 0, %s97
      %s112 = sphi 0, %s98
      %s116 = sphi 0, %s116
      %s118 = sphi 0, %s116
      %s119 = sphi 0, %s118
      %s133 = sphi 0, %s119
      %s137 = sphi 0, %s137
      %s139 = sphi 0, %s137
      %s140 = sphi 0, %s139
      %s154 = sphi 0, %s140
      %s158 = sphi 0, %s158
      %s160 = sphi 0, %s158
      %s161 = sphi 0, %s160
      %s175 = sphi 0, %s161
      %s181 = sphi 0, %s183
      %s184 = sphi 0, %s181
      %s185 = sphi 0, %s184
      %s201 = sphi 0, %s185
    $region4: #{attn_decoder_decode.1} parent=1 // loop_header_branch
      %27 = sbr.rel (%p25) target = $region8
    $region5: #{attn_decoder_decode.1} parent=1 // loop_body
      %s29 = ssub.s32 %s24, 1
      %s30 = ssub.s32 %s24, 2
      %s31 = sadd.s32 %s24, 1
      %s33 = sadd.s32 %s32, 1
      %p36 = scmp.eq.s32.totalorder %s24, 3
      %p37 = scmp.ne.s32.totalorder %s32, %s34
      %p38 = scmp.eq.s32.totalorder %s24, 0
      %p39 = por %p37, %p38
      %p40 = scmp.ne.s32.totalorder %s32, %s34
      %p41 = scmp.eq.s32.totalorder %s29, 3
      %p42 = por %p40, %p41
      %p43 = scmp.ne.s32.totalorder %s34, %s35
      %p44 = scmp.eq.s32.totalorder %s29, 0
      %p45 = por %p43, %p44
      %p46 = scmp.ne.s32.totalorder %s34, %s35
      %p47 = scmp.eq.s32.totalorder %s30, 3
      %p48 = por %p46, %p47
      %p50 = scmp.ne.s32.totalorder %s35, %s49
      %p51 = scmp.eq.s32.totalorder %s30, 0
      %p52 = por %p50, %p51
      %s54 = sadd.s32 %s53, 1
      %p57 = scmp.eq.s32.totalorder %s24, 3
      %p58 = scmp.ne.s32.totalorder %s53, %s55
      %p59 = scmp.eq.s32.totalorder %s24, 0
      %p60 = por %p58, %p59
      %p61 = scmp.ne.s32.totalorder %s53, %s55
      %p62 = scmp.eq.s32.totalorder %s29, 3
      %p63 = por %p61, %p62
      %p64 = scmp.ne.s32.totalorder %s55, %s56
      %p65 = scmp.eq.s32.totalorder %s29, 0
      %p66 = por %p64, %p65
      %p67 = scmp.ne.s32.totalorder %s55, %s56
      %p68 = scmp.eq.s32.totalorder %s30, 3
      %p69 = por %p67, %p68
      %p71 = scmp.ne.s32.totalorder %s56, %s70
      %p72 = scmp.eq.s32.totalorder %s30, 0
      %p73 = por %p71, %p72
      %s75 = sadd.s32 %s74, 1
      %p78 = scmp.eq.s32.totalorder %s24, 3
      %p79 = scmp.ne.s32.totalorder %s74, %s76
      %p80 = scmp.eq.s32.totalorder %s24, 0
      %p81 = por %p79, %p80
      %p82 = scmp.ne.s32.totalorder %s74, %s76
      %p83 = scmp.eq.s32.totalorder %s29, 3
      %p84 = por %p82, %p83
      %p85 = scmp.ne.s32.totalorder %s76, %s77
      %p86 = scmp.eq.s32.totalorder %s29, 0
      %p87 = por %p85, %p86
      %p88 = scmp.ne.s32.totalorder %s76, %s77
      %p89 = scmp.eq.s32.totalorder %s30, 3
      %p90 = por %p88, %p89
      %p92 = scmp.ne.s32.totalorder %s77, %s91
      %p93 = scmp.eq.s32.totalorder %s30, 0
      %p94 = por %p92, %p93
      %s96 = sadd.s32 %s95, 1
      %p99 = scmp.eq.s32.totalorder %s24, 3
      %p100 = scmp.ne.s32.totalorder %s95, %s97
      %p101 = scmp.eq.s32.totalorder %s24, 0
      %p102 = por %p100, %p101
      %p103 = scmp.ne.s32.totalorder %s95, %s97
      %p104 = scmp.eq.s32.totalorder %s29, 3
      %p105 = por %p103, %p104
      %p106 = scmp.ne.s32.totalorder %s97, %s98
      %p107 = scmp.eq.s32.totalorder %s29, 0
      %p108 = por %p106, %p107
      %p109 = scmp.ne.s32.totalorder %s97, %s98
      %p110 = scmp.eq.s32.totalorder %s30, 3
      %p111 = por %p109, %p110
      %p113 = scmp.ne.s32.totalorder %s98, %s112
      %p114 = scmp.eq.s32.totalorder %s30, 0
      %p115 = por %p113, %p114
      %s117 = sadd.s32 %s116, 1
      %p120 = scmp.eq.s32.totalorder %s24, 3
      %p121 = scmp.ne.s32.totalorder %s116, %s118
      %p122 = scmp.eq.s32.totalorder %s24, 0
      %p123 = por %p121, %p122
      %p124 = scmp.ne.s32.totalorder %s116, %s118
      %p125 = scmp.eq.s32.totalorder %s29, 3
      %p126 = por %p124, %p125
      %p127 = scmp.ne.s32.totalorder %s118, %s119
      %p128 = scmp.eq.s32.totalorder %s29, 0
      %p129 = por %p127, %p128
      %p130 = scmp.ne.s32.totalorder %s118, %s119
      %p131 = scmp.eq.s32.totalorder %s30, 3
      %p132 = por %p130, %p131
      %p134 = scmp.ne.s32.totalorder %s119, %s133
      %p135 = scmp.eq.s32.totalorder %s30, 0
      %p136 = por %p134, %p135
      %s138 = sadd.s32 %s137, 1
      %p141 = scmp.eq.s32.totalorder %s24, 3
      %p142 = scmp.ne.s32.totalorder %s137, %s139
      %p143 = scmp.eq.s32.totalorder %s24, 0
      %p144 = por %p142, %p143
      %p145 = scmp.ne.s32.totalorder %s137, %s139
      %p146 = scmp.eq.s32.totalorder %s29, 3
      %p147 = por %p145, %p146
      %p148 = scmp.ne.s32.totalorder %s139, %s140
      %p149 = scmp.eq.s32.totalorder %s29, 0
      %p150 = por %p148, %p149
      %p151 = scmp.ne.s32.totalorder %s139, %s140
      %p152 = scmp.eq.s32.totalorder %s30, 3
      %p153 = por %p151, %p152
      %p155 = scmp.ne.s32.totalorder %s140, %s154
      %p156 = scmp.eq.s32.totalorder %s30, 0
      %p157 = por %p155, %p156
      %s159 = sadd.s32 %s158, 1
      %p162 = scmp.eq.s32.totalorder %s24, 3
      %p163 = scmp.ne.s32.totalorder %s158, %s160
      %p164 = scmp.eq.s32.totalorder %s24, 0
      %p165 = por %p163, %p164
      %p166 = scmp.ne.s32.totalorder %s158, %s160
      %p167 = scmp.eq.s32.totalorder %s29, 3
      %p168 = por %p166, %p167
      %p169 = scmp.ne.s32.totalorder %s160, %s161
      %p170 = scmp.eq.s32.totalorder %s29, 0
      %p171 = por %p169, %p170
      %p172 = scmp.ne.s32.totalorder %s160, %s161
      %p173 = scmp.eq.s32.totalorder %s30, 3
      %p174 = por %p172, %p173
      %p176 = scmp.ne.s32.totalorder %s161, %s175
      %p177 = scmp.eq.s32.totalorder %s30, 0
      %p178 = por %p176, %p177
      %s179 = ssub.s32 %s24, %s31
      %p180 = scmp.eq.s32.totalorder %s179, 0
      %s182 = sadd.s32 %s181, 1
      %s183 = scalar_select %p180, %s181, %s182
      %p186 = pneg %p180
      %p187 = scmp.eq.s32.totalorder %s24, 3
      %p188 = por %p186, %p187
      %p189 = scmp.ne.s32.totalorder %s181, %s184
      %p190 = scmp.eq.s32.totalorder %s24, 0
      %p191 = por %p189, %p190
      %p192 = scmp.ne.s32.totalorder %s181, %s184
      %p193 = scmp.eq.s32.totalorder %s29, 3
      %p194 = por %p192, %p193
      %p195 = scmp.ne.s32.totalorder %s184, %s185
      %p196 = scmp.eq.s32.totalorder %s29, 0
      %p197 = por %p195, %p196
      %p198 = scmp.ne.s32.totalorder %s184, %s185
      %p199 = scmp.eq.s32.totalorder %s30, 3
      %p200 = por %p198, %p199
      %p202 = scmp.ne.s32.totalorder %s185, %s201
      %p203 = scmp.eq.s32.totalorder %s30, 0
      %p204 = por %p202, %p203
      %p205 = scmp.le.s32.totalorder 1, %s24
      %p206 = scmp.lt.s32.totalorder %s24, 5
      %p207 = pnand %p205, %p206
      %p208 = pneg %p207
      // Predicated region
      $region9: #{attn_decoder_decode.1} parent=5 // pred_check
        _
      $region10: #{attn_decoder_decode.1} parent=5 // pred_check_branch
        %210 = sbr.rel (%p207) target = $region12
      $region11: #{attn_decoder_decode.1} parent=5 // pred_region
        %s211 = ssub.s32 %s24, 1
        // Predicated region
        $region13: #{attn_decoder_decode.1} parent=11 // pred_check
          %p212 = pneg %p45
        $region14: #{attn_decoder_decode.1} parent=11 // pred_check_branch
          %214 = sbr.rel (%p212) target = $region16
        $region15: #{attn_decoder_decode.1} parent=11 // pred_region
          %216 = vsyncadd [#allocation6], 0
          %s217 = sshll.u32 %s1, 4
          %s218 = int_to_ptr.hbm [resolvable:$true] %s217
          %s219 = sshll.u32 [#allocation5], 4
          %s220 = int_to_ptr.vmem [resolvable:$true] %s219
          %225 = dma.hbm_to_vmem [thread:$0]  %s218, 256, %s220, [#allocation6], 16, 16, 1
        $region16: #{attn_decoder_decode.1} parent=11 // pred_fallthru
          _
        // Predicated region
        $region17: #{attn_decoder_decode.1} parent=11 // pred_check
          %p226 = pneg %p66
        $region18: #{attn_decoder_decode.1} parent=11 // pred_check_branch
          %228 = sbr.rel (%p226) target = $region20
        $region19: #{attn_decoder_decode.1} parent=11 // pred_region
          %230 = vsyncadd [#allocation8], 0
          %s232 = sshll.u32 %s2, 4
          %s233 = int_to_ptr.hbm [resolvable:$true] %s232
          %s234 = sshll.u32 [#allocation7], 4
          %s235 = int_to_ptr.vmem [resolvable:$true] %s234
          %237 = dma.hbm_to_vmem [thread:$0]  %s233, 16, %s235, [#allocation8]
        $region20: #{attn_decoder_decode.1} parent=11 // pred_fallthru
          _
        // Predicated region
        $region21: #{attn_decoder_decode.1} parent=11 // pred_check
          %p238 = pneg %p87
        $region22: #{attn_decoder_decode.1} parent=11 // pred_check_branch
          %240 = sbr.rel (%p238) target = $region24
        $region23: #{attn_decoder_decode.1} parent=11 // pred_region
          _
        $region24: #{attn_decoder_decode.1} parent=11 // pred_fallthru
          _
        // Predicated region
        $region25: #{attn_decoder_decode.1} parent=11 // pred_check
          %p241 = pneg %p108
        $region26: #{attn_decoder_decode.1} parent=11 // pred_check_branch
          %243 = sbr.rel (%p241) target = $region28
        $region27: #{attn_decoder_decode.1} parent=11 // pred_region
          _
        $region28: #{attn_decoder_decode.1} parent=11 // pred_fallthru
          _
        // Predicated region
        $region29: #{attn_decoder_decode.1} parent=11 // pred_check
          %p244 = pneg %p129
        $region30: #{attn_decoder_decode.1} parent=11 // pred_check_branch
          %246 = sbr.rel (%p244) target = $region32
        $region31: #{attn_decoder_decode.1} parent=11 // pred_region
          _
        $region32: #{attn_decoder_decode.1} parent=11 // pred_fallthru
          _
        // Predicated region
        $region33: #{attn_decoder_decode.1} parent=11 // pred_check
          %p247 = pneg %p150
        $region34: #{attn_decoder_decode.1} parent=11 // pred_check_branch
          %249 = sbr.rel (%p247) target = $region36
        $region35: #{attn_decoder_decode.1} parent=11 // pred_region
          %251 = vsyncadd [#allocation8], 0
          %s252 = sshll.u32 %s6, 4
          %s253 = int_to_ptr.hbm [resolvable:$true] %s252
          %s254 = sshll.u32 [#allocation9], 4
          %s255 = int_to_ptr.vmem [resolvable:$true] %s254
          %260 = dma.hbm_to_vmem [thread:$0]  %s253, 768, %s255, [#allocation8], 192, 192, 12
        $region36: #{attn_decoder_decode.1} parent=11 // pred_fallthru
          _
        // Predicated region
        $region37: #{attn_decoder_decode.1} parent=11 // pred_check
          %p261 = pneg %p171
        $region38: #{attn_decoder_decode.1} parent=11 // pred_check_branch
          %263 = sbr.rel (%p261) target = $region40
        $region39: #{attn_decoder_decode.1} parent=11 // pred_region
          _
        $region40: #{attn_decoder_decode.1} parent=11 // pred_fallthru
          _
      $region12: #{attn_decoder_decode.1} parent=5 // pred_fallthru
        _
      %p264 = scmp.lt.s32.totalorder %s24, 4
      // Predicated region
      $region41: #{attn_decoder_decode.1} parent=5 // pred_check
        %p265 = pneg %p264
      $region42: #{attn_decoder_decode.1} parent=5 // pred_check_branch
        %267 = sbr.rel (%p265) target = $region44
      $region43: #{attn_decoder_decode.1} parent=5 // pred_region
        _
      $region44: #{attn_decoder_decode.1} parent=5 // pred_fallthru
        _
      %p268 = scmp.le.s32.totalorder 1, %s24
      %p269 = scmp.lt.s32.totalorder %s24, 5
      %p270 = pnand %p268, %p269
      %p271 = pneg %p270
      // Predicated region
      $region45: #{attn_decoder_decode.1} parent=5 // pred_check
        _
      $region46: #{attn_decoder_decode.1} parent=5 // pred_check_branch
        %273 = sbr.rel (%p270) target = $region48
      $region47: #{attn_decoder_decode.1} parent=5 // pred_region
        %s274 = ssub.s32 %s24, 1
        // Predicated region
        $region49: #{attn_decoder_decode.1} parent=47 // pred_check
          %p275 = pneg %p45
        $region50: #{attn_decoder_decode.1} parent=47 // pred_check_branch
          %277 = sbr.rel (%p275) target = $region52
        $region51: #{attn_decoder_decode.1} parent=47 // pred_region
          %279 = dma.done [#allocation6], 256
        $region52: #{attn_decoder_decode.1} parent=47 // pred_fallthru
          _
        // Predicated region
        $region53: #{attn_decoder_decode.1} parent=47 // pred_check
          %p280 = pneg %p66
        $region54: #{attn_decoder_decode.1} parent=47 // pred_check_branch
          %282 = sbr.rel (%p280) target = $region56
        $region55: #{attn_decoder_decode.1} parent=47 // pred_region
          %284 = dma.done [#allocation8], 16
        $region56: #{attn_decoder_decode.1} parent=47 // pred_fallthru
          _
        // Predicated region
        $region57: #{attn_decoder_decode.1} parent=47 // pred_check
          %p285 = pneg %p150
        $region58: #{attn_decoder_decode.1} parent=47 // pred_check_branch
          %287 = sbr.rel (%p285) target = $region60
        $region59: #{attn_decoder_decode.1} parent=47 // pred_region
          %289 = dma.done [#allocation8], 768
        $region60: #{attn_decoder_decode.1} parent=47 // pred_fallthru
          _
        %p290 = pneg %p45
        %p291 = pneg %p42
        %p292 = pneg %p66
        %p293 = pneg %p63
        %p294 = pneg %p87
        %p295 = pneg %p84
        %p296 = pneg %p108
        %p297 = pneg %p105
        %p298 = pneg %p129
        %p299 = pneg %p126
        %p300 = pneg %p150
        %p301 = pneg %p147
        %p302 = pneg %p171
        %p303 = pneg %p168
        %p304 = pneg %p197
        %p305 = pneg %p194
        %p306 = scmp.lt.s32.totalorder %s29, 3
        %s307 = scalar_select %p306, %s29, 3
        %s308 = scalar_lea.vmem %s8, %s307
        %p309 = scmp.lt.s32.totalorder %s29, 3
        %s310 = scalar_select %p309, %s29, 3
        %s311 = scalar_lea.vmem %s8, %s310
        %p313 = scmp.eq.s32.totalorder %s29, 0
        // Predicated region
        $region61: #{attn_decoder_decode.1} parent=47 // pred_check
          %p314 = pneg %p313
        $region62: #{attn_decoder_decode.1} parent=47 // pred_check_branch
          %316 = sbr.rel (%p314) target = $region64
        $region63: #{attn_decoder_decode.1} parent=47 // pred_region
          %v317 = vld [vmem:[#allocation7] sm:$0x1]
          %vm318 = vcmask 253952
          %319 = vst.msk [vmem:[#allocation2] sm:$0x1] %vm318, %v317
        $region64: #{attn_decoder_decode.1} parent=47 // pred_fallthru
          _
        %s320 = sld [smem:[#allocation4 + %s29]]
        %s321 = scalar_lea.vmem [#allocation5], %s320
        %v322 = vld [vmem:[%s321] sm:$0x1]
        %v323 = vld [vmem:[#allocation2] sm:$0x1]
        %v325 = vperm.slane %v323, 0
        %326 = vrot.lane.b32.xlu0 %v325, 32
        %v327 = vpop.permute.xlu0 %326
        %vm329 = vcmask 261120
        %v330 = vsel %vm329, %v322, %v327
        %v331 = vpack.c.bf16 %v330, %v330
        %v332 = vld [vmem:[%s4] sm:$0xff]
        %v333 = vld [vmem:[%s4 + $0x8] sm:$0xf]
        %v334 = vld [vmem:[%s4 + $0xc] sm:$0xff]
        %v335 = vld [vmem:[%s4 + $0x14] sm:$0xf]
        %v336 = vld [vmem:[%s4 + $0x18] sm:$0xff]
        %v337 = vld [vmem:[%s4 + $0x20] sm:$0xf]
        %v338 = vld [vmem:[%s4 + $0x24] sm:$0xff]
        %v339 = vld [vmem:[%s4 + $0x2c] sm:$0xf]
        %v340 = vld [vmem:[%s4 + $0x30] sm:$0xff]
        %v341 = vld [vmem:[%s4 + $0x38] sm:$0xf]
        %v342 = vld [vmem:[%s4 + $0x3c] sm:$0xff]
        %v343 = vld [vmem:[%s4 + $0x44] sm:$0xf]
        %v344 = vld [vmem:[%s4 + $0x48] sm:$0xff]
        %v345 = vld [vmem:[%s4 + $0x50] sm:$0xf]
        %v346 = vld [vmem:[%s4 + $0x54] sm:$0xff]
        %v347 = vld [vmem:[%s4 + $0x5c] sm:$0xf]
        %v348 = vld [vmem:[%s5] sm:$0x7]
        %v365 = vunpack.c.l.b16 %v332
        %v366 = vunpack.c.h.b16 %v332
        %v367 = vunpack.c.l.b16 %v333
        %v368 = vunpack.c.l.b16 %v334
        %v369 = vunpack.c.h.b16 %v334
        %v370 = vunpack.c.l.b16 %v335
        %v371 = vunpack.c.l.b16 %v336
        %v372 = vunpack.c.h.b16 %v336
        %v373 = vunpack.c.l.b16 %v337
        %v374 = vunpack.c.l.b16 %v338
        %v375 = vunpack.c.h.b16 %v338
        %v376 = vunpack.c.l.b16 %v339
        %v377 = vunpack.c.l.b16 %v340
        %v378 = vunpack.c.h.b16 %v340
        %v379 = vunpack.c.l.b16 %v341
        %v380 = vunpack.c.l.b16 %v342
        %v381 = vunpack.c.h.b16 %v342
        %v382 = vunpack.c.l.b16 %v343
        %v383 = vunpack.c.l.b16 %v344
        %v384 = vunpack.c.h.b16 %v344
        %v385 = vunpack.c.l.b16 %v345
        %v386 = vunpack.c.l.b16 %v346
        %v387 = vunpack.c.h.b16 %v346
        %v388 = vunpack.c.l.b16 %v347
        %v389 = vpack.c.b16 %v368, %v365
        %v390 = vpack.c.b16 %v369, %v366
        %v391 = vpack.c.b16 %v370, %v367
        %v392 = vpack.c.b16 %v374, %v371
        %v393 = vpack.c.b16 %v375, %v372
        %v394 = vpack.c.b16 %v376, %v373
        %v395 = vpack.c.b16 %v380, %v377
        %v396 = vpack.c.b16 %v381, %v378
        %v397 = vpack.c.b16 %v382, %v379
        %v398 = vpack.c.b16 %v386, %v383
        %v399 = vpack.c.b16 %v387, %v384
        %v400 = vpack.c.b16 %v388, %v385
        %v414 = vperm.slane %v348, 0
        %v415 = vperm.slane %v348, 1
        %v416 = vperm.slane %v348, 2
        %vm420 = vcmask 523264
        %v422 = vsel %vm420, %v331, 0
        %424 = vmatpush.bf16.msra.mxu0 0
        %425 = vmatpush.bf16.msra.mxu0 0
        %426 = vmatpush.bf16.msra.mxu0 0
        %427 = vmatpush.bf16.msra.mxu0 0
        %428 = vmatpush.bf16.msra.mxu0 %v398
        %429 = vmatpush.bf16.msra.mxu0 %v395
        %430 = vmatpush.bf16.msra.mxu0 %v392
        %431 = vmatpush.bf16.msra.mxu0 %v389
        %432 = vmatmul.bf16.gmra.mxu0 %v422
        %v433 = vpop.f32.mrf.mxu0
        %v434 = vadd.f32 %v414, %v433
        %v435 = vpop.f32.mrf.mxu0
        %436 = vdwg.mxu0
        %437 = vmatpush.bf16.msra.mxu0 0
        %438 = vmatpush.bf16.msra.mxu0 0
        %439 = vmatpush.bf16.msra.mxu0 0
        %440 = vmatpush.bf16.msra.mxu0 0
        %441 = vmatpush.bf16.msra.mxu0 %v399
        %442 = vmatpush.bf16.msra.mxu0 %v396
        %443 = vmatpush.bf16.msra.mxu0 %v393
        %444 = vmatpush.bf16.msra.mxu0 %v390
        %445 = vmatmul.bf16.gmra.mxu0 %v422
        %v446 = vpop.f32.mrf.mxu0
        %v447 = vadd.f32 %v415, %v446
        %v448 = vpop.f32.mrf.mxu0
        %449 = vdwg.mxu0
        %450 = vmatpush.bf16.msra.mxu0 0
        %451 = vmatpush.bf16.msra.mxu0 0
        %452 = vmatpush.bf16.msra.mxu0 0
        %453 = vmatpush.bf16.msra.mxu0 0
        %454 = vmatpush.bf16.msra.mxu0 %v400
        %455 = vmatpush.bf16.msra.mxu0 %v397
        %456 = vmatpush.bf16.msra.mxu0 %v394
        %457 = vmatpush.bf16.msra.mxu0 %v391
        %458 = vmatmul.bf16.gmra.mxu0 %v422
        %v459 = vpop.f32.mrf.mxu0
        %v460 = vadd.f32 %v416, %v459
        %v461 = vpop.f32.mrf.mxu0
        %462 = vdwg.mxu0
        %vm463 = vcmask 1040384
        %v464 = vsel %vm463, %v434, -inf
        %465 = vmax.xlane.f32.xlu0 %v464
        %v466 = vpop.xlane.xlu0 %465
        %v467 = vsub.f32 %v434, %v466
        %v468 = vmul.f32 %v467, 1.442695
        %v469 = vpow.pop %v468
        %v470 = vsel %vm463, %v469, 0.0
        %471 = vadd.xlane.f32.xlu0 %v470
        %v472 = vpop.xlane.xlu0 %471
        %v473 = vrcp.pop %v472
        %v474 = vmul.f32 %v472, %v473
        %v475 = vsub.f32 1.0, %v474
        %v476 = vmul.f32 %v473, %v475
        %v477 = vadd.f32 %v473, %v476
        %vm478 = vweird.f32 %v472
        %vm479 = vweird.f32 %v473
        %vm480 = vmor %vm478, %vm479
        %v481 = vsel %vm480, %v473, %v477
        %v482 = vand.u32 2147483647, %v472
        %vm483 = vcmp.eq.f32.partialorder %v482, 8.507059e+37
        %v484 = vand.u32 %v472, 2147483648
        %v485 = vor.u32 1.1754944e-38, %v484
        %v486 = vsel %vm483, %v485, %v481
        %v487 = vmul.f32 %v469, %v486
        %v488 = vpack.c.bf16 %v487, %v487
        %v489 = vld [vmem:[%s3] sm:$0xf]
        %v490 = vld [vmem:[%s3 + $0x4] sm:$0xf]
        %v491 = vld [vmem:[%s3 + $0x8] sm:$0xf]
        %v492 = vld [vmem:[%s3 + $0xc] sm:$0xf]
        %v493 = vld [vmem:[%s3 + $0x10] sm:$0xf]
        %v494 = vld [vmem:[%s3 + $0x14] sm:$0xf]
        %v495 = vld [vmem:[%s3 + $0x18] sm:$0xf]
        %v496 = vld [vmem:[%s3 + $0x1c] sm:$0xf]
        %v497 = vld [vmem:[%s3 + $0x20] sm:$0xf]
        %v498 = vld [vmem:[%s3 + $0x24] sm:$0xf]
        %v499 = vld [vmem:[%s3 + $0x28] sm:$0xf]
        %v500 = vld [vmem:[%s3 + $0x2c] sm:$0xf]
        %v501 = vld [vmem:[%s3 + $0x30] sm:$0xf]
        %v502 = vld [vmem:[%s3 + $0x34] sm:$0xf]
        %v503 = vld [vmem:[%s3 + $0x38] sm:$0xf]
        %v504 = vld [vmem:[%s3 + $0x3c] sm:$0xf]
        %v521 = vunpack.c.l.b16 %v489
        %v522 = vunpack.c.l.b16 %v490
        %v523 = vunpack.c.l.b16 %v491
        %v524 = vunpack.c.l.b16 %v492
        %v525 = vunpack.c.l.b16 %v493
        %v526 = vunpack.c.l.b16 %v494
        %v527 = vunpack.c.l.b16 %v495
        %v528 = vunpack.c.l.b16 %v496
        %v529 = vunpack.c.l.b16 %v497
        %v530 = vunpack.c.l.b16 %v498
        %v531 = vunpack.c.l.b16 %v499
        %v532 = vunpack.c.l.b16 %v500
        %v533 = vunpack.c.l.b16 %v501
        %v534 = vunpack.c.l.b16 %v502
        %v535 = vunpack.c.l.b16 %v503
        %v536 = vunpack.c.l.b16 %v504
        %v537 = vpack.c.b16 %v522, %v521
        %v538 = vpack.c.b16 %v524, %v523
        %v539 = vpack.c.b16 %v526, %v525
        %v540 = vpack.c.b16 %v528, %v527
        %v541 = vpack.c.b16 %v530, %v529
        %v542 = vpack.c.b16 %v532, %v531
        %v543 = vpack.c.b16 %v534, %v533
        %v544 = vpack.c.b16 %v536, %v535
        %553 = vmatpush.bf16.msra.mxu0 %v544
        %554 = vmatpush.bf16.msra.mxu0 %v543
        %555 = vmatpush.bf16.msra.mxu0 %v542
        %556 = vmatpush.bf16.msra.mxu0 %v541
        %557 = vmatpush.bf16.msra.mxu0 %v540
        %558 = vmatpush.bf16.msra.mxu0 %v539
        %559 = vmatpush.bf16.msra.mxu0 %v538
        %560 = vmatpush.bf16.msra.mxu0 %v537
        %561 = vmatmul.bf16.gmra.mxu0 %v488
        %v562 = vpop.f32.mrf.mxu0
        %v563 = vadd.f32 0.0, %v562
        %v564 = vpop.f32.mrf.mxu0
        %565 = vdwg.mxu0
        %v566 = vpack.c.bf16 %v563, %v563
        %v567 = vld [vmem:[#allocation9] sm:$0xf]
        %v568 = vld [vmem:[#allocation9 + $0xc] sm:$0xf]
        %v569 = vld [vmem:[#allocation9 + $0x18] sm:$0xf]
        %v570 = vld [vmem:[#allocation9 + $0x24] sm:$0xf]
        %v575 = vunpack.c.l.b16 %v567
        %v576 = vunpack.c.l.b16 %v568
        %v577 = vunpack.c.l.b16 %v569
        %v578 = vunpack.c.l.b16 %v570
        %v579 = vpack.c.b16 %v576, %v575
        %v580 = vpack.c.b16 %v578, %v577
        %v584 = vsel %vm329, %v566, 0
        %586 = vmatpush.bf16.msra.mxu0 0
        %587 = vmatpush.bf16.msra.mxu0 0
        %588 = vmatpush.bf16.msra.mxu0 0
        %589 = vmatpush.bf16.msra.mxu0 0
        %590 = vmatpush.bf16.msra.mxu0 0
        %591 = vmatpush.bf16.msra.mxu0 0
        %592 = vmatpush.bf16.msra.mxu0 %v580
        %593 = vmatpush.bf16.msra.mxu0 %v579
        %594 = vmatmul.bf16.gmra.mxu0 %v584
        %v595 = vpop.f32.mrf.mxu0
        %v596 = vadd.f32 0.0, %v595
        %v597 = vpop.f32.mrf.mxu0
        %598 = vdwg.mxu0
        %v599 = vadd.f32 %v447, %v596
        %v600 = vmax.f32 %v599, 0.0
        %v601 = vpack.c.bf16 %v600, %v600
        %v602 = vld [vmem:[#allocation9 + $0x4] sm:$0xf]
        %v603 = vld [vmem:[#allocation9 + $0x10] sm:$0xf]
        %v604 = vld [vmem:[#allocation9 + $0x1c] sm:$0xf]
        %v605 = vld [vmem:[#allocation9 + $0x28] sm:$0xf]
        %v606 = vld [vmem:[%s7 + $0x1] sm:$0x1]
        %v611 = vunpack.c.l.b16 %v602
        %v612 = vunpack.c.l.b16 %v603
        %v613 = vunpack.c.l.b16 %v604
        %v614 = vunpack.c.l.b16 %v605
        %v615 = vpack.c.b16 %v612, %v611
        %v616 = vpack.c.b16 %v614, %v613
        %v620 = vsel %vm329, %v601, 0
        %622 = vmatpush.bf16.msra.mxu0 0
        %623 = vmatpush.bf16.msra.mxu0 0
        %624 = vmatpush.bf16.msra.mxu0 0
        %625 = vmatpush.bf16.msra.mxu0 0
        %626 = vmatpush.bf16.msra.mxu0 0
        %627 = vmatpush.bf16.msra.mxu0 0
        %628 = vmatpush.bf16.msra.mxu0 %v616
        %629 = vmatpush.bf16.msra.mxu0 %v615
        %630 = vmatmul.bf16.gmra.mxu0 %v620
        %v631 = vpop.f32.mrf.mxu0
        %v632 = vadd.f32 %v606, %v631
        %v633 = vpop.f32.mrf.mxu0
        %634 = vdwg.mxu0
        %v635 = vadd.f32 %v632, %v460
        %v636 = vxor.u32 %v635, 2147483648
        %v637 = vmul.f32 %v636, 1.442695
        %v638 = vpow.pop %v637
        %v639 = vadd.f32 %v638, 1.0
        %v640 = vrcp.pop %v639
        %v641 = vmul.f32 %v639, %v640
        %v642 = vsub.f32 1.0, %v641
        %v643 = vmul.f32 %v640, %v642
        %v644 = vadd.f32 %v640, %v643
        %vm645 = vweird.f32 %v639
        %vm646 = vweird.f32 %v640
        %vm647 = vmor %vm645, %vm646
        %v648 = vsel %vm647, %v640, %v644
        %v649 = vand.u32 2147483647, %v639
        %vm650 = vcmp.eq.f32.partialorder %v649, 8.507059e+37
        %v651 = vand.u32 %v639, 2147483648
        %v652 = vor.u32 1.1754944e-38, %v651
        %v653 = vsel %vm650, %v652, %v648
        %v654 = vmul.f32 1.0, %v653
        %656 = vrot.lane.b32.xlu0 %v460, 64
        %v657 = vpop.permute.xlu0 %656
        %v659 = vmul.f32 %v654, %v657
        %661 = vrot.lane.b32.xlu0 %v659, 64
        %v662 = vpop.permute.xlu0 %661
        %v664 = vadd.f32 %v632, %v662
        %v665 = vtanh.pop %v664
        %v666 = vsub.f32 1.0, %v654
        %668 = vrot.lane.b32.xlu0 %v665, 96
        %v669 = vpop.permute.xlu0 %668
        %v671 = vmul.f32 %v666, %v669
        %v672 = vmul.f32 %v654, %v327
        %v673 = vadd.f32 %v671, %v672
        %675 = vrot.lane.b32.xlu0 %v673, 96
        %v676 = vpop.permute.xlu0 %675
        %vm678 = vcmask 253952
        %679 = vst.msk [vmem:[#allocation2] sm:$0x1] %vm678, %v676
        %v680 = vpack.c.bf16 %v673, %v673
        %v681 = vld [vmem:[#allocation9 + $0x8] sm:$0xf]
        %v682 = vld [vmem:[#allocation9 + $0x14] sm:$0xf]
        %v683 = vld [vmem:[#allocation9 + $0x20] sm:$0xf]
        %v684 = vld [vmem:[#allocation9 + $0x2c] sm:$0xf]
        %v685 = vld [vmem:[%s7 + $0x2] sm:$0x1]
        %687 = vrot.lane.b32.xlu0 %v680, 96
        %v688 = vpop.permute.xlu0 %687
        %v693 = vunpack.c.l.b16 %v681
        %v694 = vunpack.c.l.b16 %v682
        %v695 = vunpack.c.l.b16 %v683
        %v696 = vunpack.c.l.b16 %v684
        %v697 = vpack.c.b16 %v694, %v693
        %v698 = vpack.c.b16 %v696, %v695
        %v702 = vsel %vm329, %v688, 0
        %704 = vmatpush.bf16.msra.mxu0 0
        %705 = vmatpush.bf16.msra.mxu0 0
        %706 = vmatpush.bf16.msra.mxu0 0
        %707 = vmatpush.bf16.msra.mxu0 0
        %708 = vmatpush.bf16.msra.mxu0 0
        %709 = vmatpush.bf16.msra.mxu0 0
        %710 = vmatpush.bf16.msra.mxu0 %v698
        %711 = vmatpush.bf16.msra.mxu0 %v697
        %712 = vmatmul.bf16.gmra.mxu0 %v702
        %v713 = vpop.f32.mrf.mxu0
        %v714 = vadd.f32 %v685, %v713
        %v715 = vpop.f32.mrf.mxu0
        %716 = vdwg.mxu0
        %v717 = vsel %vm463, %v714, -inf
        %718 = vmax.xlane.f32.xlu0 %v717
        %v719 = vpop.xlane.xlu0 %718
        %v720 = vsub.f32 %v714, %v719
        %v721 = vmul.f32 %v720, 1.442695
        %v722 = vpow.pop %v721
        %v723 = vsel %vm463, %v722, 0.0
        %724 = vadd.xlane.f32.xlu0 %v723
        %v725 = vpop.xlane.xlu0 %724
        %v726 = vlog2.pop %v725
        %v727 = vmul.f32 %v726, 0.6931472
        %v728 = vadd.f32 %v719, %v727
        %v729 = vsub.f32 %v714, %v728
        %vm730 = vcmask 122880
        %731 = vst.msk [vmem:[%s311] sm:$0x1] %vm730, %v729
        %vm732 = vcmask 516352
        %733 = vst.msk [vmem:[%s311] sm:$0x1] %vm732, %v673
        %735 = vrot.lane.b32.xlu0 %v487, 64
        %v736 = vpop.permute.xlu0 %735
        %vm738 = vcmask 598528
        %739 = vst.msk [vmem:[%s311] sm:$0x1] %vm738, %v736
        %p740 = scmp.lt.s32.totalorder %s29, 3
        %s741 = scalar_select %p740, %s29, 3
        %s742 = scalar_lea.vmem %s8, %s741
        // Predicated region
        $region65: #{attn_decoder_decode.1} parent=47 // pred_check
          %p743 = pneg %p194
        $region66: #{attn_decoder_decode.1} parent=47 // pred_check_branch
          %745 = sbr.rel (%p743) target = $region68
        $region67: #{attn_decoder_decode.1} parent=47 // pred_region
          _
        $region68: #{attn_decoder_decode.1} parent=47 // pred_fallthru
          _
      $region48: #{attn_decoder_decode.1} parent=5 // pred_fallthru
        _
      %p746 = scmp.le.s32.totalorder 2, %s24
      // Predicated region
      $region69: #{attn_decoder_decode.1} parent=5 // pred_check
        %p747 = pneg %p746
      $region70: #{attn_decoder_decode.1} parent=5 // pred_check_branch
        %749 = sbr.rel (%p747) target = $region72
      $region71: #{attn_decoder_decode.1} parent=5 // pred_region
        %s750 = ssub.s32 %s24, 2
        // Predicated region
        $region73: #{attn_decoder_decode.1} parent=71 // pred_check
          %p751 = pneg %p200
        $region74: #{attn_decoder_decode.1} parent=71 // pred_check_branch
          %753 = sbr.rel (%p751) target = $region76
        $region75: #{attn_decoder_decode.1} parent=71 // pred_region
          %p754 = scmp.lt.s32.totalorder %s30, 3
          %s755 = scalar_select %p754, %s30, 3
          %s756 = scalar_lea.vmem %s8, %s755
        $region76: #{attn_decoder_decode.1} parent=71 // pred_fallthru
          _
      $region72: #{attn_decoder_decode.1} parent=5 // pred_fallthru
        _
    $region6: #{attn_decoder_decode.1} parent=1 // loop_footer
      %s28 = sadd.s32 1, %s24
    $region7: #{attn_decoder_decode.1} parent=1 // loop_footer_branch
      %23 = sbr.rel target = $region3
    $region8: #{attn_decoder_decode.1} parent=1 // loop_exit
      _
    %757 = vsyncpa [#allocation6], 1
    %s758 = scalar_lea.sflag [#allocation6], 1
    %759 = vsyncpa %s758, 1
    %760 = vsyncpa [#allocation8], 1

</llo_original>
